<compile_context>
chip_gen: v7x
topology: tpu7x:2x2x1
jax: 0.10.0
libtpu: 0.0.40
codegen_flags: <defaults>
</compile_context>

<pallas_src>
import jax
import jax.numpy as jnp
from jax.experimental import pallas as pl
from jax.experimental.pallas import tpu as pltpu


def _round_up(v: int, m: int) -> int:
    return ((v + m - 1) // m) * m


def _lane_gran(dim: int) -> int:
    # 256-wide tiles fill the 256x256 MXU on v6e/v7x; use 128 only when the
    # padded dim itself would be 128 (avoids 4x padding waste on tiny dims).
    return 256 if dim > 128 else 128


def _pick_tile(dim: int, max_tile: int, gran: int) -> int:
    """Largest tile <= max_tile, multiple of `gran`, minimizing padding of dim."""
    dim_aligned = _round_up(dim, gran)
    if dim_aligned <= max_tile:
        return dim_aligned
    best, best_pad = gran, _round_up(dim, gran) * 16
    for t in range(gran, max_tile + 1, gran):
        pad = _round_up(dim, t)
        if pad < best_pad or (pad == best_pad and t > best):
            best, best_pad = t, pad
    return best


def _device_vmem_bytes() -> int:
    try:
        return int(pltpu.get_tpu_info().vmem_capacity_bytes)
    except Exception:
        return 128 << 20  # conservative v5e/v6e assumption


def _pick_static_tiles(N: int, K: int, compute_dtype):
    vmem_cap = _device_vmem_bytes()
    small_vmem = vmem_cap <= (64 << 20)  # v7x: 64 MiB VMEM per TensorCore
    tm_max = 512
    tn_max, tk_max = (512, 512) if small_vmem else (1024, 1024)

    tn = _pick_tile(N, tn_max, _lane_gran(N))
    tk = _pick_tile(K, tk_max, _lane_gran(K))

    # v7x has 2 TensorCores sharing the "parallel" grid axes.  Small-batch
    # calls have a single M block, so make sure the N axis alone gives >= 2
    # blocks (each half still >= 256 wide to keep the MXU full).
    if small_vmem and _round_up(N, tn) == tn and tn >= 512 and (tn // 2) % 128 == 0:
        tn //= 2

    itemsize = jnp.dtype(compute_dtype).itemsize
    m_gran = max(8, 32 // itemsize)  # (8,128) f32 min tile / (16,128) bf16

    # v5e scoped-VMEM default is only 16 MiB -> always set the limit.
    vmem_limit = min(vmem_cap * 3 // 4, 64 << 20)
    return tm_max, tn, tk, m_gran, vmem_limit


# ----------------------------- kernels ---------------------------------


def _linear_kernel_accout(x_ref, w_ref, b_ref, o_ref):
    """f32 output: accumulate directly into the resident output tile."""
    @pl.when(pl.program_id(2) == 0)
    def _():
        # bias folded into the init -> added exactly once per (i, j) tile
        o_ref[...] = jnp.broadcast_to(b_ref[...], o_ref.shape).astype(o_ref.dtype)

    o_ref[...] += jnp.dot(x_ref[...], w_ref[...], preferred_element_type=jnp.float32)


def _linear_kernel_scratch(x_ref, w_ref, b_ref, o_ref, acc_ref):
    """Narrow output dtypes: f32 VMEM accumulator, cast once at the K tail."""
    k = pl.program_id(2)

    @pl.when(k == 0)
    def _():
        acc_ref[...] = jnp.broadcast_to(b_ref[...], acc_ref.shape).astype(jnp.float32)

    acc_ref[...] += jnp.dot(x_ref[...], w_ref[...], preferred_element_type=jnp.float32)

    @pl.when(k == pl.num_programs(2) - 1)
    def _():
        o_ref[...] = acc_ref[...].astype(o_ref.dtype)


# ------------------------- parameter prep (one-time) --------------------


def init_linear(weight, bias, *, compute_dtype=jnp.bfloat16):
    """One-time prep: weight -> [K, N], cast to compute dtype, pad to tiles.

    weight: [N, K] (PyTorch out_features x in_features layout)
    bias:   [N]
    """
    N, K = weight.shape
    tm_max, tn, tk, m_gran, vmem_limit = _pick_static_tiles(N, K, compute_dtype)
    n_pad = _round_up(N, tn)
    k_pad = _round_up(K, tk)

    w_kn = jnp.asarray(weight).T.astype(compute_dtype)  # [K, N], done ONCE
    if (k_pad, n_pad) != (K, N):
        w_kn = jnp.pad(w_kn, ((0, k_pad - K), (0, n_pad - N)))

    b2d = jnp.asarray(bias, jnp.float32).reshape(1, N)
    if n_pad != N:
        b2d = jnp.pad(b2d, ((0, 0), (0, n_pad - N)))

    return {
        "w_kn": w_kn, "b2d": b2d, "N": N, "K": K,
        "tn": tn, "tk": tk, "tm_max": tm_max, "m_gran": m_gran,
        "compute_dtype": compute_dtype, "vmem_limit": vmem_limit,
    }


# ------------------------------ forward ---------------------------------


def linear_apply(params, x, *, out_dtype=jnp.float32):
    """y = x @ W.T + b   with W pre-prepared by init_linear()."""
    M, K = x.shape
    assert K == params["K"], "in_features mismatch"
    cd = params["compute_dtype"]
    tn, tk, m_gran = params["tn"], params["tk"], params["m_gran"]
    w_kn, b2d = params["w_kn"], params["b2d"]
    k_pad, n_pad = w_kn.shape
    N = params["N"]

    tm = _pick_tile(M, params["tm_max"], m_gran)
    m_pad = _round_up(M, tm)

    xc = x.astype(cd)
    if (m_pad, k_pad) != (M, K):
        xc = jnp.pad(xc, ((0, m_pad - M), (0, k_pad - K)))

    grid = (m_pad // tm, n_pad // tn, k_pad // tk)

    f32_out = jnp.dtype(out_dtype) == jnp.dtype(jnp.float32)
    kernel = _linear_kernel_accout if f32_out else _linear_kernel_scratch
    scratch = [] if f32_out else [pltpu.VMEM((tm, tn), jnp.float32)]

    cd_b = jnp.dtype(cd).itemsize
    out_b = jnp.dtype(out_dtype).itemsize
    cost = pl.CostEstimate(
        flops=2 * m_pad * n_pad * k_pad,
        transcendentals=0,
        bytes_accessed=(
            m_pad * k_pad * cd_b * (n_pad // tn)   # x read once per N block
            + k_pad * n_pad * cd_b * (m_pad // tm)  # W read once per M block
            + n_pad * 4 * (m_pad // tm)             # bias
            + m_pad * n_pad * out_b                 # output write
        ),
    )

    out = pl.pallas_call(
        kernel,
        out_shape=jax.ShapeDtypeStruct((m_pad, n_pad), out_dtype),
        grid_spec=pltpu.PrefetchScalarGridSpec(
            num_scalar_prefetch=0,
            grid=grid,
            in_specs=[
                pl.BlockSpec((tm, tk), lambda i, j, k: (i, k)),   # x tile
                pl.BlockSpec((tk, tn), lambda i, j, k: (k, j)),   # W^T [K,N] tile
                pl.BlockSpec((1, tn), lambda i, j, k: (0, j)),    # bias tile
            ],
            out_specs=pl.BlockSpec((tm, tn), lambda i, j, k: (i, j)),
            scratch_shapes=scratch,
        ),
        compiler_params=pltpu.CompilerParams(
            dimension_semantics=("parallel", "parallel", "arbitrary"),
            vmem_limit_bytes=params["vmem_limit"],
        ),
        cost_estimate=cost,
    )(xc, w_kn, b2d)

    if (m_pad, n_pad) != (M, N):
        out = out[:M, :N]
    return out


if __name__ == "__main__":
    key = jax.random.PRNGKey(0)
    k_x, k_w = jax.random.split(key)

    bsz, in_features, out_features = 8, 32, 64

    # Deterministic parameter init (xavier_normal_ for weight, zeros for bias)
    std = (2.0 / (in_features + out_features)) ** 0.5
    weight = std * jax.random.normal(k_w, (out_features, in_features), jnp.float32)
    bias = jnp.zeros((out_features,), jnp.float32)

    x = jax.random.normal(k_x, (bsz, in_features), jnp.float32)
    y_ref = x @ weight.T + bias

    # Exact f32 path (tight tolerance)
    params_f32 = init_linear(weight, bias, compute_dtype=jnp.float32)
    y32 = jax.block_until_ready(linear_apply(params_f32, x))
    assert y32.shape == (bsz, out_features)
    assert jnp.allclose(y32, y_ref, atol=1e-5, rtol=1e-5)

    # Default bf16-feed / f32-accumulate path (MXU-rate), looser tolerance
    params_bf16 = init_linear(weight, bias)  # compute_dtype=bfloat16
    y16 = jax.block_until_ready(linear_apply(params_bf16, x))
    assert y16.shape == (bsz, out_features)
    assert jnp.allclose(y16, y_ref, atol=5e-2, rtol=5e-2)

    print("KERNEL_OK")
</pallas_src>

<mosaic_0001>
module attributes {stable_mosaic.version = 11 : i64} {
  func.func @_linear_kernel_accout(%arg0: i32, %arg1: i32, %arg2: i32, %arg3: memref<8x128xf32, #tpu.memory_space<vmem>>, %arg4: memref<128x128xf32, #tpu.memory_space<vmem>>, %arg5: memref<1x128xf32, #tpu.memory_space<vmem>>, %arg6: memref<8x128xf32, #tpu.memory_space<vmem>>) attributes {dimension_semantics = [#tpu.dimension_semantics<parallel>, #tpu.dimension_semantics<parallel>, #tpu.dimension_semantics<arbitrary>], iteration_bounds = array<i64: 1, 1, 1>, scalar_prefetch = 0 : i64, scratch_operands = 0 : i64, tpu.core_type = #tpu.core_type<tc>, window_params = [{transform_indices = @transform_0, window_bounds = array<i64: 8, 128>}, {transform_indices = @transform_1, window_bounds = array<i64: 128, 128>}, {transform_indices = @transform_2, window_bounds = array<i64: 1, 128>}, {transform_indices = @transform_3, window_bounds = array<i64: 8, 128>}]} {
    %c0_i32 = arith.constant 0 : i32
    %0 = arith.cmpi eq, %arg2, %c0_i32 : i32
    %1 = arith.extui %0 : i1 to i32
    %c0_i32_0 = arith.constant 0 : i32
    %2 = arith.cmpi ne, %1, %c0_i32_0 : i32
    scf.if %2 {
      %c0_8 = arith.constant 0 : index
      %c0_9 = arith.constant 0 : index
      %9 = vector.load %arg5[%c0_8, %c0_9] : memref<1x128xf32, #tpu.memory_space<vmem>>, vector<1x128xf32>
      %10 = vector.shape_cast %9 : vector<1x128xf32> to vector<1x128xf32>
      %11 = vector.broadcast %10 : vector<1x128xf32> to vector<8x128xf32>
      %c0_10 = arith.constant 0 : index
      %c0_11 = arith.constant 0 : index
      %12 = vector.load %arg6[%c0_10, %c0_11] : memref<8x128xf32, #tpu.memory_space<vmem>>, vector<8x128xf32>
      tpu.vector_store %arg6[%c0_10, %c0_11], %11 {strides = array<i32>} : memref<8x128xf32, #tpu.memory_space<vmem>>, vector<8x128xf32>,
    } else {
    }
    %c0 = arith.constant 0 : index
    %c0_1 = arith.constant 0 : index
    %3 = vector.load %arg6[%c0, %c0_1] : memref<8x128xf32, #tpu.memory_space<vmem>>, vector<8x128xf32>
    %c0_2 = arith.constant 0 : index
    %c0_3 = arith.constant 0 : index
    %4 = vector.load %arg3[%c0_2, %c0_3] : memref<8x128xf32, #tpu.memory_space<vmem>>, vector<8x128xf32>
    %c0_4 = arith.constant 0 : index
    %c0_5 = arith.constant 0 : index
    %5 = vector.load %arg4[%c0_4, %c0_5] : memref<128x128xf32, #tpu.memory_space<vmem>>, vector<128x128xf32>
    %cst = arith.constant dense<0.000000e+00> : vector<8x128xf32>
    %6 = tpu.matmul %4, %5, %cst {dimension_numbers = #tpu.dot_dimension_numbers<[1], [0], [0], [1], [0, 0, 1, 1], [], []>} : vector<8x128xf32>, vector<128x128xf32>, vector<8x128xf32> -> vector<8x128xf32>
    %7 = arith.addf %3, %6 : vector<8x128xf32>
    %c0_6 = arith.constant 0 : index
    %c0_7 = arith.constant 0 : index
    %8 = vector.load %arg6[%c0_6, %c0_7] : memref<8x128xf32, #tpu.memory_space<vmem>>, vector<8x128xf32>
    tpu.vector_store %arg6[%c0_6, %c0_7], %7 {strides = array<i32>} : memref<8x128xf32, #tpu.memory_space<vmem>>, vector<8x128xf32>,
    return
  }
  func.func @transform_0(%arg0: i32, %arg1: i32, %arg2: i32) -> (i32, i32) {
    %c0_i32 = arith.constant 0 : i32
    return %arg0, %arg2 : i32, i32
  }
  func.func @transform_1(%arg0: i32, %arg1: i32, %arg2: i32) -> (i32, i32) {
    %c0_i32 = arith.constant 0 : i32
    return %arg2, %arg1 : i32, i32
  }
  func.func @transform_2(%arg0: i32, %arg1: i32, %arg2: i32) -> (i32, i32) {
    %c0_i32 = arith.constant 0 : i32
    %c0_i32_0 = arith.constant 0 : i32
    return %c0_i32, %arg1 : i32, i32
  }
  func.func @transform_3(%arg0: i32, %arg1: i32, %arg2: i32) -> (i32, i32) {
    %c0_i32 = arith.constant 0 : i32
    return %arg0, %arg1 : i32, i32
  }
}

</mosaic_0001>

<llo_original>
// kernel: tpu_custom_call.1
$region0: #{tpu_custom_call.1}
  #allocation0 [shape = 'u32[]', space=smem, size = 0x4, offset = 0x4, fixed_abs, tag = 'smem constant byte address 0x4 - core index']
  #allocation1 [shape = 'u32[144,128]{1,0:T(1,128)}', space=vmem, size = 0x12000, scoped, tag = 'internal scratch']
  %s0 = inlined_call_operand.hbm [shape: f32[8,128], index: 0, kind: input, shape index: {}]
  %s1 = inlined_call_operand.hbm [shape: f32[128,128], index: 1, kind: input, shape index: {}]
  %s2 = inlined_call_operand.hbm [shape: f32[1,128], index: 2, kind: input, shape index: {}]
  %s3 = inlined_call_operand.hbm [shape: f32[8,128], index: 3, kind: output, shape index: {}]
  %s4 = sld [smem:[#allocation0]]
  $region38: #{tpu_custom_call.1} parent=0
    _
  %s6 = ssub.s32 1, %s4
  %s7 = scalar_select 0, %s6, %s4
  $region1: #{tpu_custom_call.1} parent=0
    #allocation2 [shape = 'u8[4096]{0}', space=vmem, size = 0x1000, scoped, tag = 'input window, operand 0, single buffered']
    #allocation3 [shape = 's32[1]{0}', space=sflag, size = 0x4, scoped, tag = 'scoped memory for tpu_custom_call.1']
    #allocation4 [shape = 's32[1]{0}', space=sflag, size = 0x4, scoped, tag = 'scoped memory for tpu_custom_call.1']
    #allocation5 [shape = 'u8[65536]{0}', space=vmem, size = 0x10000, scoped, tag = 'input window, operand 1, single buffered']
    #allocation6 [shape = 's32[1]{0}', space=sflag, size = 0x4, scoped, tag = 'scoped memory for tpu_custom_call.1']
    #allocation7 [shape = 'u8[512]{0}', space=vmem, size = 0x400, scoped, tag = 'input window, operand 2, single buffered']
    #allocation8 [shape = 'u8[4096]{0}', space=vmem, size = 0x1000, scoped, tag = 'output window, operand 0, single buffered']
    %8 = vsyncpa [#allocation3], 0
    %9 = vsyncpa [#allocation6], 0
    %10 = vsyncpa [#allocation4], 0
    // Predicated region
    $region2: #{tpu_custom_call.1} parent=1 // pred_check
      _
    $region3: #{tpu_custom_call.1} parent=1 // pred_check_branch
      %12 = sbr.rel (0) target = $region5
    $region4: #{tpu_custom_call.1} parent=1 // pred_region
      %s14 = ssub.s32 128, 128
      %15 = vsyncadd [#allocation3], %s14
      %s17 = sshll.u32 [#allocation2], 4
      %s18 = int_to_ptr.vmem [resolvable:$true] %s17
      %20 = dma.hbm_to_vmem [thread:$0]  %s0, 128, %s18, [#allocation3]
    $region5: #{tpu_custom_call.1} parent=1 // pred_fallthru
      _
    // Predicated region
    $region6: #{tpu_custom_call.1} parent=1 // pred_check
      _
    $region7: #{tpu_custom_call.1} parent=1 // pred_check_branch
      %22 = sbr.rel (0) target = $region9
    $region8: #{tpu_custom_call.1} parent=1 // pred_region
      %s24 = ssub.s32 2048, 2048
      %25 = vsyncadd [#allocation6], %s24
      %s26 = sshll.u32 [#allocation5], 4
      %s27 = int_to_ptr.vmem [resolvable:$true] %s26
      %32 = dma.hbm_to_vmem [thread:$0]  %s1, 2048, %s27, [#allocation6], 128, 128, 8
    $region9: #{tpu_custom_call.1} parent=1 // pred_fallthru
      _
    // Predicated region
    $region10: #{tpu_custom_call.1} parent=1 // pred_check
      _
    $region11: #{tpu_custom_call.1} parent=1 // pred_check_branch
      %34 = sbr.rel (0) target = $region13
    $region12: #{tpu_custom_call.1} parent=1 // pred_region
      %s36 = ssub.s32 16, 16
      %37 = vsyncadd [#allocation6], %s36
      %s39 = sshll.u32 [#allocation7], 4
      %s40 = int_to_ptr.vmem [resolvable:$true] %s39
      %42 = dma.hbm_to_vmem [thread:$0]  %s2, 16, %s40, [#allocation6]
    $region13: #{tpu_custom_call.1} parent=1 // pred_fallthru
      _
    // Predicated region
    $region14: #{tpu_custom_call.1} parent=1 // pred_check
      _
    $region15: #{tpu_custom_call.1} parent=1 // pred_check_branch
      %44 = sbr.rel (0) target = $region17
    $region16: #{tpu_custom_call.1} parent=1 // pred_region
      %45 = dma.done [#allocation3], 128
    $region17: #{tpu_custom_call.1} parent=1 // pred_fallthru
      _
    // Predicated region
    $region18: #{tpu_custom_call.1} parent=1 // pred_check
      _
    $region19: #{tpu_custom_call.1} parent=1 // pred_check_branch
      %47 = sbr.rel (0) target = $region21
    $region20: #{tpu_custom_call.1} parent=1 // pred_region
      %48 = dma.done [#allocation6], 2048
    $region21: #{tpu_custom_call.1} parent=1 // pred_fallthru
      _
    // Predicated region
    $region22: #{tpu_custom_call.1} parent=1 // pred_check
      _
    $region23: #{tpu_custom_call.1} parent=1 // pred_check_branch
      %50 = sbr.rel (0) target = $region25
    $region24: #{tpu_custom_call.1} parent=1 // pred_region
      %51 = dma.done [#allocation6], 16
    $region25: #{tpu_custom_call.1} parent=1 // pred_fallthru
      _
    %p52 = scmp.eq.s32.totalorder 0, 0
    // Predicated region
    $region26: #{tpu_custom_call.1} parent=1 // pred_check
      %p53 = pneg %p52
    $region27: #{tpu_custom_call.1} parent=1 // pred_check_branch
      %55 = sbr.rel (%p53) target = $region29
    $region28: #{tpu_custom_call.1} parent=1 // pred_region
      %v56 = vld [vmem:[#allocation7] sm:$0x1]
      %v58 = vlaneseq
      %v59 = vshrl.u32 %v58, 7
      %v60 = vsub.s32 0, %v59
      %v61 = vrot.slane %v56, %v60
      %63 = vst [vmem:[#allocation8] sm:$0xff] %v61
    $region29: #{tpu_custom_call.1} parent=1 // pred_fallthru
      _
    %v64 = vld [vmem:[#allocation8] sm:$0xff]
    %v65 = vld [vmem:[#allocation2] sm:$0xff]
    %v66 = vld [vmem:[#allocation5] sm:$0xff]
    %v67 = vld [vmem:[#allocation5 + $0x8] sm:$0xff]
    %v68 = vld [vmem:[#allocation5 + $0x10] sm:$0xff]
    %v69 = vld [vmem:[#allocation5 + $0x18] sm:$0xff]
    %v70 = vld [vmem:[#allocation5 + $0x20] sm:$0xff]
    %v71 = vld [vmem:[#allocation5 + $0x28] sm:$0xff]
    %v72 = vld [vmem:[#allocation5 + $0x30] sm:$0xff]
    %v73 = vld [vmem:[#allocation5 + $0x38] sm:$0xff]
    %v74 = vld [vmem:[#allocation5 + $0x40] sm:$0xff]
    %v75 = vld [vmem:[#allocation5 + $0x48] sm:$0xff]
    %v76 = vld [vmem:[#allocation5 + $0x50] sm:$0xff]
    %v77 = vld [vmem:[#allocation5 + $0x58] sm:$0xff]
    %v78 = vld [vmem:[#allocation5 + $0x60] sm:$0xff]
    %v79 = vld [vmem:[#allocation5 + $0x68] sm:$0xff]
    %v80 = vld [vmem:[#allocation5 + $0x70] sm:$0xff]
    %v81 = vld [vmem:[#allocation5 + $0x78] sm:$0xff]
    %82 = vmatprep.subr.mxu0 0.0
    %83 = vmatpush1.msra.mxu0 %v66
    %84 = vmatprep.subr.mxu0 0.0
    %85 = vmatpush1.msra.mxu0 %v67
    %86 = vmatprep.subr.mxu0 0.0
    %87 = vmatpush1.msra.mxu0 %v68
    %88 = vmatprep.subr.mxu0 0.0
    %89 = vmatpush1.msra.mxu0 %v69
    %90 = vmatprep.subr.mxu0 0.0
    %91 = vmatpush1.msra.mxu0 %v70
    %92 = vmatprep.subr.mxu0 0.0
    %93 = vmatpush1.msra.mxu0 %v71
    %94 = vmatprep.subr.mxu0 0.0
    %95 = vmatpush1.msra.mxu0 %v72
    %96 = vmatprep.subr.mxu0 0.0
    %97 = vmatpush1.msra.mxu0 %v73
    %98 = vmatprep.subr.mxu0 0.0
    %99 = vmatpush1.msra.mxu0 %v74
    %100 = vmatprep.subr.mxu0 0.0
    %101 = vmatpush1.msra.mxu0 %v75
    %102 = vmatprep.subr.mxu0 0.0
    %103 = vmatpush1.msra.mxu0 %v76
    %104 = vmatprep.subr.mxu0 0.0
    %105 = vmatpush1.msra.mxu0 %v77
    %106 = vmatprep.subr.mxu0 0.0
    %107 = vmatpush1.msra.mxu0 %v78
    %108 = vmatprep.subr.mxu0 0.0
    %109 = vmatpush1.msra.mxu0 %v79
    %110 = vmatprep.subr.mxu0 0.0
    %111 = vmatpush1.msra.mxu0 %v80
    %112 = vmatprep.subr.mxu0 0.0
    %113 = vmatpush1.msra.mxu0 %v81
    %114 = vmatprep.subr.mxu0 0.0
    %115 = vmatpush1.msra.mxu0 0.0
    %116 = vmatprep.subr.mxu0 0.0
    %117 = vmatpush1.msra.mxu0 0.0
    %118 = vmatprep.subr.mxu0 0.0
    %119 = vmatpush1.msra.mxu0 0.0
    %120 = vmatprep.subr.mxu0 0.0
    %121 = vmatpush1.msra.mxu0 0.0
    %122 = vmatprep.subr.mxu0 0.0
    %123 = vmatpush1.msra.mxu0 0.0
    %124 = vmatprep.subr.mxu0 0.0
    %125 = vmatpush1.msra.mxu0 0.0
    %126 = vmatprep.subr.mxu0 0.0
    %127 = vmatpush1.msra.mxu0 0.0
    %128 = vmatprep.subr.mxu0 0.0
    %129 = vmatpush1.msra.mxu0 0.0
    %130 = vmatprep.subr.mxu0 0.0
    %131 = vmatpush1.msra.mxu0 0.0
    %132 = vmatprep.subr.mxu0 0.0
    %133 = vmatpush1.msra.mxu0 0.0
    %134 = vmatprep.subr.mxu0 0.0
    %135 = vmatpush1.msra.mxu0 0.0
    %136 = vmatprep.subr.mxu0 0.0
    %137 = vmatpush1.msra.mxu0 0.0
    %138 = vmatprep.subr.mxu0 0.0
    %139 = vmatpush1.msra.mxu0 0.0
    %140 = vmatprep.subr.mxu0 0.0
    %141 = vmatpush1.msra.mxu0 0.0
    %142 = vmatprep.subr.mxu0 0.0
    %143 = vmatpush1.msra.mxu0 0.0
    %144 = vmatprep.subr.mxu0 0.0
    %145 = vmatpush1.msra.mxu0 0.0
    %146 = vmatprep.mubr.f32.mxu0 0.0
    %147 = vmatmul.mubr.f32.gmra.mrb[0].mxu0 %v65
    %v148 = vpop.f32.mrb[0].mxu0
    %v149 = vadd.f32 0.0, %v148
    %v150 = vpop.f32.mrb[0].mxu0
    %151 = vdwg.mxu0
    %v152 = vadd.f32 %v64, %v149
    %153 = vst [vmem:[#allocation8] sm:$0xff] %v152
    // Predicated region
    $region30: #{tpu_custom_call.1} parent=1 // pred_check
      _
    $region31: #{tpu_custom_call.1} parent=1 // pred_check_branch
      %155 = sbr.rel (0) target = $region33
    $region32: #{tpu_custom_call.1} parent=1 // pred_region
      %s157 = ssub.s32 128, 128
      %158 = vsyncadd [#allocation4], %s157
      %s160 = sshll.u32 [#allocation8], 4
      %s161 = int_to_ptr.vmem [resolvable:$true] %s160
      %163 = dma.vmem_to_hbm [thread:$0]  %s161, 128, %s3, [#allocation4]
    $region33: #{tpu_custom_call.1} parent=1 // pred_fallthru
      _
    // Predicated region
    $region34: #{tpu_custom_call.1} parent=1 // pred_check
      _
    $region35: #{tpu_custom_call.1} parent=1 // pred_check_branch
      %165 = sbr.rel (0) target = $region37
    $region36: #{tpu_custom_call.1} parent=1 // pred_region
      %166 = dma.done [#allocation4], 128
    $region37: #{tpu_custom_call.1} parent=1 // pred_fallthru
      _
    %167 = vsyncpa [#allocation3], 1
    %168 = vsyncpa [#allocation6], 1
    %169 = vsyncpa [#allocation4], 1

</llo_original>
